<compile_context>
chip_gen: v6e
topology: v6e:2x2x1
jax: 0.10.0
libtpu: 0.0.40
codegen_flags: <defaults>
</compile_context>

<pallas_src>
import jax
import jax.numpy as jnp
from jax.experimental import pallas as pl
from jax.experimental.pallas import tpu as pltpu


def _round_up(x, m):
    return ((x + m - 1) // m) * m


def _linear_kernel(x_ref, wt_ref, b_ref, o_ref):
    # x_ref : (tm, Hp)  bf16 lane-dense packed input row tile
    # wt_ref: (Hp, Hp)  bf16 packed (block-diagonal) W^T, resident across grid
    # b_ref : (1, Hp)   f32 packed bias row
    # o_ref : (tm, Hp)  f32 output row tile
    acc = jnp.dot(x_ref[...], wt_ref[...], preferred_element_type=jnp.float32)
    o_ref[...] = (acc + b_ref[...]).astype(o_ref.dtype)  # bias add stays f32


def linear_pallas(x2d, wt_packed, bias_packed, pack, *, tm_target=512):
    """y = x2d @ W^T + b (nn.Linear semantics) via a lane-dense packed matmul.

    x2d         : (M, H) f32
    wt_packed   : (pack*H, pack*H) bf16 block-diagonal of W^T
    bias_packed : (1, pack*H) f32 (bias tiled `pack` times)
    """
    M, H = x2d.shape
    Hp = pack * H

    # --- pack `pack` logical H-wide rows into one Hp(=128)-lane row ---------
    row_pad = (-M) % pack
    if row_pad:
        x2d = jnp.pad(x2d, ((0, row_pad), (0, 0)))
    Mp = (M + row_pad) // pack
    x_packed = x2d.reshape(Mp, Hp).astype(jnp.bfloat16)

    # --- bounded row tile: multiple of 8 (sublane rule), <= tm_target, and
    #     at most ~half the packed rows so the parallel axis has >= 2 steps
    #     when possible (keeps both v7x TensorCores fed). -------------------
    tm = min(tm_target, _round_up(max(Mp // 2, 1), 8))
    tm = max(_round_up(tm, 8), 8)
    tile_pad = (-Mp) % tm
    if tile_pad:
        x_packed = jnp.pad(x_packed, ((0, tile_pad), (0, 0)))
    Mp_total = Mp + tile_pad
    grid = (Mp_total // tm,)

    cost = pl.CostEstimate(
        flops=2 * Mp_total * Hp * Hp,          # actual MXU work (incl. zero blocks)
        transcendentals=0,
        bytes_accessed=(Mp_total * Hp * 2      # bf16 x in
                        + Mp_total * Hp * 4    # f32 out
                        + Hp * Hp * 2          # bf16 packed weight
                        + Hp * 4),             # f32 packed bias
    )

    out = pl.pallas_call(
        _linear_kernel,
        out_shape=jax.ShapeDtypeStruct((Mp_total, Hp), jnp.float32),
        grid_spec=pltpu.PrefetchScalarGridSpec(
            num_scalar_prefetch=0,
            grid=grid,
            in_specs=[
                pl.BlockSpec((tm, Hp), lambda i: (i, 0)),   # x packed row tile
                pl.BlockSpec((Hp, Hp), lambda i: (0, 0)),   # resident packed W^T
                pl.BlockSpec((1, Hp), lambda i: (0, 0)),    # packed bias row
            ],
            out_specs=pl.BlockSpec((tm, Hp), lambda i: (i, 0)),
        ),
        compiler_params=pltpu.CompilerParams(
            dimension_semantics=("parallel",),
            # Tiles here total ~1 MiB; set the budget explicitly.  If H grows,
            # re-derive for v7x (64 MiB physical VMEM vs 128 MiB on v5e/v6e)
            # and switch the weight to a K-tiled accumulator scheme instead
            # of a fully resident (Hp, Hp) block.
            vmem_limit_bytes=32 * 1024 * 1024,
        ),
        cost_estimate=cost,
    )(x_packed, wt_packed, bias_packed)

    # --- unpack: (Mp_total, Hp) -> (M, H) -----------------------------------
    y = out[:Mp].reshape(Mp * pack, H)
    if row_pad:
        y = y[:M]
    return y


class TransformerEvolvedPallas:
    """JAX/Pallas port of the TransformerEvolved stub (forward == dummy Linear)."""

    def __init__(self, hidden_size=32, num_layers=12, num_attention_heads=8,
                 evolution_enabled=False, key=jax.random.PRNGKey(0)):
        self.hidden_size = hidden_size
        self.num_layers = num_layers
        self.num_attention_heads = num_attention_heads
        self.evolution_enabled = evolution_enabled

        # Deterministic init mimicking nn.Linear default: U(-1/sqrt(H), 1/sqrt(H))
        kw, kb = jax.random.split(key)
        bound = 1.0 / (hidden_size ** 0.5)
        self.weight = jax.random.uniform(
            kw, (hidden_size, hidden_size), jnp.float32, -bound, bound)
        self.bias = jax.random.uniform(
            kb, (hidden_size,), jnp.float32, -bound, bound)

        # Lane-dense packing factor: pack `pack` H-wide logical rows into one
        # 128-lane row whenever H divides 128 (H=32 -> pack=4, Hp=128).
        if hidden_size < 128 and 128 % hidden_size == 0:
            self.pack = 128 // hidden_size
        else:
            self.pack = 1

        # Pre-transpose + block-diagonalize + cast the weight ONCE at init
        # (avoids a per-call weight.T HBM pass).  kron(I_pack, W^T) is the
        # block-diagonal packed weight; bias is tiled to match.
        wt = self.weight.T                                        # (H_in, H_out)
        eye = jnp.eye(self.pack, dtype=wt.dtype)
        self.wt_packed = jnp.kron(eye, wt).astype(jnp.bfloat16)   # (pack*H, pack*H)
        self.bias_packed = jnp.tile(self.bias, self.pack).reshape(
            1, self.pack * hidden_size)                           # (1, pack*H) f32

    def __call__(self, x):
        # x: [batch, seq, hidden]
        B, S, H = x.shape
        assert H == self.hidden_size
        x2d = x.reshape(B * S, H)
        y2d = linear_pallas(x2d, self.wt_packed, self.bias_packed, self.pack)
        return y2d.reshape(B, S, H)


if __name__ == "__main__":
    key = jax.random.PRNGKey(0)
    k_in, k_model = jax.random.split(key)

    batch, seq, hidden = 2, 8, 32
    x = jax.random.normal(k_in, (batch, seq, hidden), jnp.float32)

    model = TransformerEvolvedPallas(hidden_size=hidden, key=k_model)

    y = jax.block_until_ready(model(x))
    assert y.shape == (batch, seq, hidden)
    assert y.dtype == jnp.float32

    x2d = x.reshape(-1, hidden)

    # Tight reference: identical math to the kernel (bf16 operands, f32 acc,
    # f32 bias add).
    x_bf = x2d.astype(jnp.bfloat16).astype(jnp.float32)
    wt_bf = model.weight.T.astype(jnp.bfloat16).astype(jnp.float32)
    y_ref_bf = (x_bf @ wt_bf + model.bias).reshape(batch, seq, hidden)
    assert jnp.allclose(y, y_ref_bf, atol=1e-4, rtol=1e-4), (
        "max err vs bf16-operand reference: "
        f"{float(jnp.max(jnp.abs(y - y_ref_bf)))}")

    # Loose sanity check vs. full-f32 nn.Linear semantics (bf16 input rounding).
    y_ref_f32 = (x2d @ model.weight.T + model.bias).reshape(batch, seq, hidden)
    assert jnp.allclose(y, y_ref_f32, atol=1e-1, rtol=1e-1)

    print("KERNEL_OK")
</pallas_src>

<mosaic_0001>
module attributes {stable_mosaic.version = 11 : i64} {
  func.func @_linear_kernel(%arg0: i32, %arg1: memref<8x128xbf16, #tpu.memory_space<vmem>>, %arg2: memref<128x128xbf16, #tpu.memory_space<vmem>>, %arg3: memref<1x128xf32, #tpu.memory_space<vmem>>, %arg4: memref<8x128xf32, #tpu.memory_space<vmem>>) attributes {dimension_semantics = [#tpu.dimension_semantics<parallel>], iteration_bounds = array<i64: 1>, scalar_prefetch = 0 : i64, scratch_operands = 0 : i64, tpu.core_type = #tpu.core_type<tc>, window_params = [{transform_indices = @transform_0, window_bounds = array<i64: 8, 128>}, {pipeline_mode = #tpu.pipeline_mode<synchronous>, transform_indices = @transform_1, window_bounds = array<i64: 128, 128>}, {pipeline_mode = #tpu.pipeline_mode<synchronous>, transform_indices = @transform_2, window_bounds = array<i64: 1, 128>}, {transform_indices = @transform_3, window_bounds = array<i64: 8, 128>}]} {
    %c0 = arith.constant 0 : index
    %c0_0 = arith.constant 0 : index
    %0 = vector.load %arg1[%c0, %c0_0] : memref<8x128xbf16, #tpu.memory_space<vmem>>, vector<8x128xbf16>
    %c0_1 = arith.constant 0 : index
    %c0_2 = arith.constant 0 : index
    %1 = vector.load %arg2[%c0_1, %c0_2] : memref<128x128xbf16, #tpu.memory_space<vmem>>, vector<128x128xbf16>
    %cst = arith.constant dense<0.000000e+00> : vector<8x128xf32>
    %2 = tpu.matmul %0, %1, %cst {dimension_numbers = #tpu.dot_dimension_numbers<[1], [0], [0], [1], [0, 0, 1, 1], [], []>} : vector<8x128xbf16>, vector<128x128xbf16>, vector<8x128xf32> -> vector<8x128xf32>
    %c0_3 = arith.constant 0 : index
    %c0_4 = arith.constant 0 : index
    %3 = vector.load %arg3[%c0_3, %c0_4] : memref<1x128xf32, #tpu.memory_space<vmem>>, vector<1x128xf32>
    %4 = vector.broadcast %3 : vector<1x128xf32> to vector<8x128xf32>
    %5 = arith.addf %2, %4 : vector<8x128xf32>
    %c0_5 = arith.constant 0 : index
    %c0_6 = arith.constant 0 : index
    %6 = vector.load %arg4[%c0_5, %c0_6] : memref<8x128xf32, #tpu.memory_space<vmem>>, vector<8x128xf32>
    tpu.vector_store %arg4[%c0_5, %c0_6], %5 {strides = array<i32>} : memref<8x128xf32, #tpu.memory_space<vmem>>, vector<8x128xf32>,
    return
  }
  func.func @transform_0(%arg0: i32) -> (i32, i32) {
    %c0_i32 = arith.constant 0 : i32
    %c0_i32_0 = arith.constant 0 : i32
    return %arg0, %c0_i32 : i32, i32
  }
  func.func @transform_1(%arg0: i32) -> (i32, i32) {
    %c0_i32 = arith.constant 0 : i32
    %c0_i32_0 = arith.constant 0 : i32
    %c0_i32_1 = arith.constant 0 : i32
    return %c0_i32, %c0_i32_0 : i32, i32
  }
  func.func @transform_2(%arg0: i32) -> (i32, i32) {
    %c0_i32 = arith.constant 0 : i32
    %c0_i32_0 = arith.constant 0 : i32
    %c0_i32_1 = arith.constant 0 : i32
    return %c0_i32, %c0_i32_0 : i32, i32
  }
  func.func @transform_3(%arg0: i32) -> (i32, i32) {
    %c0_i32 = arith.constant 0 : i32
    %c0_i32_0 = arith.constant 0 : i32
    return %arg0, %c0_i32 : i32, i32
  }
}

</mosaic_0001>

<llo_original>
// kernel: tpu_custom_call.1
$region0: #{tpu_custom_call.1}
  #allocation0 [shape = 'u32[]', space=smem, size = 0x4, offset = 0x4, fixed_abs, tag = 'smem constant byte address 0x4 - core index']
  #allocation1 [shape = 'u32[144,128]{1,0:T(1,128)}', space=vmem, size = 0x12000, scoped, tag = 'internal scratch']
  %s0 = inlined_call_operand.hbm [shape: bf16[8,128], index: 0, kind: input, shape index: {}]
  %s1 = inlined_call_operand.hbm [shape: bf16[128,128], index: 1, kind: input, shape index: {}]
  %s2 = inlined_call_operand.vmem [shape: f32[1,128], index: 2, kind: input, shape index: {}]
  %s3 = inlined_call_operand.hbm [shape: f32[8,128], index: 3, kind: output, shape index: {}]
  %s4 = sld [smem:[#allocation0]]
  $region30: #{tpu_custom_call.1} parent=0
    _
  %s6 = ssub.s32 1, %s4
  %s7 = scalar_select 0, %s6, %s4
  $region1: #{tpu_custom_call.1} parent=0
    #allocation2 [shape = 'u8[2048]{0}', space=vmem, size = 0x800, scoped, tag = 'input window, operand 0, single buffered']
    #allocation3 [shape = 's32[1]{0}', space=sflag, size = 0x4, scoped, tag = 'scoped memory for tpu_custom_call.1']
    #allocation4 [shape = 's32[1]{0}', space=sflag, size = 0x4, scoped, tag = 'scoped memory for tpu_custom_call.1']
    #allocation5 [shape = 'u8[32768]{0}', space=vmem, size = 0x8000, scoped, tag = 'input window, operand 1, single buffered']
    #allocation6 [shape = 's32[1]{0}', space=sflag, size = 0x4, scoped, tag = 'scoped memory for tpu_custom_call.1']
    #allocation7 [shape = 'u8[4096]{0}', space=vmem, size = 0x1000, scoped, tag = 'output window, operand 0, single buffered']
    %8 = vsyncpa [#allocation3], 0
    %9 = vsyncpa [#allocation6], 0
    %10 = vsyncpa [#allocation4], 0
    // Predicated region
    $region2: #{tpu_custom_call.1} parent=1 // pred_check
      _
    $region3: #{tpu_custom_call.1} parent=1 // pred_check_branch
      %12 = sbr.rel (0) target = $region5
    $region4: #{tpu_custom_call.1} parent=1 // pred_region
      %s14 = ssub.s32 64, 64
      %15 = vsyncadd [#allocation3], %s14
      %s17 = sshll.u32 [#allocation2], 4
      %s18 = int_to_ptr.vmem [resolvable:$true] %s17
      %20 = dma.hbm_to_vmem [thread:$0]  %s0, 64, %s18, [#allocation3]
    $region5: #{tpu_custom_call.1} parent=1 // pred_fallthru
      _
    // Predicated region
    $region6: #{tpu_custom_call.1} parent=1 // pred_check
      _
    $region7: #{tpu_custom_call.1} parent=1 // pred_check_branch
      %22 = sbr.rel (0) target = $region9
    $region8: #{tpu_custom_call.1} parent=1 // pred_region
      %s24 = ssub.s32 1024, 1024
      %25 = vsyncadd [#allocation6], %s24
      %s26 = sshll.u32 [#allocation5], 4
      %s27 = int_to_ptr.vmem [resolvable:$true] %s26
      %32 = dma.hbm_to_vmem [thread:$0]  %s1, 1024, %s27, [#allocation6], 64, 64, 4
    $region9: #{tpu_custom_call.1} parent=1 // pred_fallthru
      _
    // Predicated region
    $region10: #{tpu_custom_call.1} parent=1 // pred_check
      _
    $region11: #{tpu_custom_call.1} parent=1 // pred_check_branch
      %34 = sbr.rel (0) target = $region13
    $region12: #{tpu_custom_call.1} parent=1 // pred_region
      _
    $region13: #{tpu_custom_call.1} parent=1 // pred_fallthru
      _
    // Predicated region
    $region14: #{tpu_custom_call.1} parent=1 // pred_check
      _
    $region15: #{tpu_custom_call.1} parent=1 // pred_check_branch
      %36 = sbr.rel (0) target = $region17
    $region16: #{tpu_custom_call.1} parent=1 // pred_region
      %37 = dma.done [#allocation3], 64
    $region17: #{tpu_custom_call.1} parent=1 // pred_fallthru
      _
    // Predicated region
    $region18: #{tpu_custom_call.1} parent=1 // pred_check
      _
    $region19: #{tpu_custom_call.1} parent=1 // pred_check_branch
      %39 = sbr.rel (0) target = $region21
    $region20: #{tpu_custom_call.1} parent=1 // pred_region
      %40 = dma.done [#allocation6], 1024
    $region21: #{tpu_custom_call.1} parent=1 // pred_fallthru
      _
    %v42 = vld [vmem:[#allocation2] sm:$0xf]
    %v43 = vld [vmem:[#allocation5] sm:$0xf]
    %v44 = vld [vmem:[#allocation5 + $0x4] sm:$0xf]
    %v45 = vld [vmem:[#allocation5 + $0x8] sm:$0xf]
    %v46 = vld [vmem:[#allocation5 + $0xc] sm:$0xf]
    %v47 = vld [vmem:[#allocation5 + $0x10] sm:$0xf]
    %v48 = vld [vmem:[#allocation5 + $0x14] sm:$0xf]
    %v49 = vld [vmem:[#allocation5 + $0x18] sm:$0xf]
    %v50 = vld [vmem:[#allocation5 + $0x1c] sm:$0xf]
    %v51 = vld [vmem:[#allocation5 + $0x20] sm:$0xf]
    %v52 = vld [vmem:[#allocation5 + $0x24] sm:$0xf]
    %v53 = vld [vmem:[#allocation5 + $0x28] sm:$0xf]
    %v54 = vld [vmem:[#allocation5 + $0x2c] sm:$0xf]
    %v55 = vld [vmem:[#allocation5 + $0x30] sm:$0xf]
    %v56 = vld [vmem:[#allocation5 + $0x34] sm:$0xf]
    %v57 = vld [vmem:[#allocation5 + $0x38] sm:$0xf]
    %v58 = vld [vmem:[#allocation5 + $0x3c] sm:$0xf]
    %v59 = vld [vmem:[%s2] sm:$0x1]
    %v61 = vlaneseq
    %v62 = vshrl.u32 %v61, 7
    %v63 = vsub.s32 0, %v62
    %v64 = vrot.slane %v59, %v63
    %v82 = vunpack.c.l.b16 %v43
    %v83 = vunpack.c.l.b16 %v44
    %v84 = vunpack.c.l.b16 %v45
    %v85 = vunpack.c.l.b16 %v46
    %v86 = vunpack.c.l.b16 %v47
    %v87 = vunpack.c.l.b16 %v48
    %v88 = vunpack.c.l.b16 %v49
    %v89 = vunpack.c.l.b16 %v50
    %v90 = vunpack.c.l.b16 %v51
    %v91 = vunpack.c.l.b16 %v52
    %v92 = vunpack.c.l.b16 %v53
    %v93 = vunpack.c.l.b16 %v54
    %v94 = vunpack.c.l.b16 %v55
    %v95 = vunpack.c.l.b16 %v56
    %v96 = vunpack.c.l.b16 %v57
    %v97 = vunpack.c.l.b16 %v58
    %v98 = vpack.c.b16 %v83, %v82
    %v99 = vpack.c.b16 %v85, %v84
    %v100 = vpack.c.b16 %v87, %v86
    %v101 = vpack.c.b16 %v89, %v88
    %v102 = vpack.c.b16 %v91, %v90
    %v103 = vpack.c.b16 %v93, %v92
    %v104 = vpack.c.b16 %v95, %v94
    %v105 = vpack.c.b16 %v97, %v96
    %114 = vmatprep.subr.bf16.mxu0 0
    %115 = vmatpush1.bf16.msra.mxu0 %v105
    %116 = vmatprep.subr.bf16.mxu0 0
    %117 = vmatpush1.bf16.msra.mxu0 %v104
    %118 = vmatprep.subr.bf16.mxu0 0
    %119 = vmatpush1.bf16.msra.mxu0 %v103
    %120 = vmatprep.subr.bf16.mxu0 0
    %121 = vmatpush1.bf16.msra.mxu0 %v102
    %122 = vmatprep.subr.bf16.mxu0 0
    %123 = vmatpush1.bf16.msra.mxu0 %v101
    %124 = vmatprep.subr.bf16.mxu0 0
    %125 = vmatpush1.bf16.msra.mxu0 %v100
    %126 = vmatprep.subr.bf16.mxu0 0
    %127 = vmatpush1.bf16.msra.mxu0 %v99
    %128 = vmatprep.subr.bf16.mxu0 0
    %129 = vmatpush1.bf16.msra.mxu0 %v98
    %130 = vmatprep.subr.bf16.mxu0 0
    %131 = vmatpush2.bf16.msra.mxu0 0
    %132 = vmatprep.subr.bf16.mxu0 0
    %133 = vmatpush2.bf16.msra.mxu0 0
    %134 = vmatprep.subr.bf16.mxu0 0
    %135 = vmatpush2.bf16.msra.mxu0 0
    %136 = vmatprep.subr.bf16.mxu0 0
    %137 = vmatpush2.bf16.msra.mxu0 0
    %138 = vmatprep.subr.bf16.mxu0 0
    %139 = vmatpush2.bf16.msra.mxu0 0
    %140 = vmatprep.subr.bf16.mxu0 0
    %141 = vmatpush2.bf16.msra.mxu0 0
    %142 = vmatprep.subr.bf16.mxu0 0
    %143 = vmatpush2.bf16.msra.mxu0 0
    %144 = vmatprep.subr.bf16.mxu0 0
    %145 = vmatpush2.bf16.msra.mxu0 0
    %146 = vmatprep.mubr.bf16.mxu0 0
    %147 = vmatmul.mubr.bf16.gmra.mxu0 %v42
    %v148 = vpop.f32.mrf.mxu0
    %v149 = vadd.f32 %v64, %v148
    %v150 = vpop.f32.mrf.mxu0
    %v151 = vpop.f32.mrf.mxu0
    %v152 = vpop.f32.mrf.mxu0
    %153 = vdwg.mxu0
    %154 = vst [vmem:[#allocation7] sm:$0xff] %v149
    // Predicated region
    $region22: #{tpu_custom_call.1} parent=1 // pred_check
      _
    $region23: #{tpu_custom_call.1} parent=1 // pred_check_branch
      %156 = sbr.rel (0) target = $region25
    $region24: #{tpu_custom_call.1} parent=1 // pred_region
      %s158 = ssub.s32 128, 128
      %159 = vsyncadd [#allocation4], %s158
      %s161 = sshll.u32 [#allocation7], 4
      %s162 = int_to_ptr.vmem [resolvable:$true] %s161
      %164 = dma.vmem_to_hbm [thread:$0]  %s162, 128, %s3, [#allocation4]
    $region25: #{tpu_custom_call.1} parent=1 // pred_fallthru
      _
    // Predicated region
    $region26: #{tpu_custom_call.1} parent=1 // pred_check
      _
    $region27: #{tpu_custom_call.1} parent=1 // pred_check_branch
      %166 = sbr.rel (0) target = $region29
    $region28: #{tpu_custom_call.1} parent=1 // pred_region
      %167 = dma.done [#allocation4], 128
    $region29: #{tpu_custom_call.1} parent=1 // pred_fallthru
      _
    %168 = vsyncpa [#allocation3], 1
    %169 = vsyncpa [#allocation6], 1
    %170 = vsyncpa [#allocation4], 1

</llo_original>
